<compile_context>
chip_gen: v7x
topology: tpu7x:2x2x1
jax: 0.10.0
libtpu: 0.0.40
codegen_flags: <defaults>
</compile_context>

<pallas_src>
import jax
import jax.numpy as jnp
from jax import lax
from jax.experimental import pallas as pl
from jax.experimental.pallas import tpu as pltpu


def _classifier_kernel(x_ref, w_ref, b_ref, o_ref):
    # x_ref: (TM, K), w_ref: (N, K) -> contract on K (i.e. x @ W^T) on the MXU,
    # accumulate in f32, add bias once in f32, single cast + store.
    acc = lax.dot_general(
        x_ref[...],
        w_ref[...],
        dimension_numbers=(((1,), (1,)), ((), ())),
        preferred_element_type=jnp.float32,
    )
    o_ref[...] = (acc + b_ref[...]).astype(o_ref.dtype)


def _round_up(v, m):
    return (v + m - 1) // m * m


def classifier_layer(x, weight, bias, *, block_m=512):
    """Pallas equivalent of nn.Linear(ninp_classifier, num_classes).

    Args:
      x:      [..., ninp_classifier] float32
      weight: [num_classes, ninp_classifier] (PyTorch nn.Linear layout, used as-is)
      bias:   [num_classes]
    Returns:
      [..., num_classes] float32
    """
    ninp = weight.shape[1]
    num_classes = weight.shape[0]
    assert x.shape[-1] == ninp, (
        "The input data is not equal to the input dimension of ClassifierLayer."
    )

    lead_shape = x.shape[:-1]
    x2d = x.reshape(-1, ninp)          # [M, K]
    M, K = x2d.shape
    N = num_classes
    b2d = bias.reshape(1, N)           # [1, N]

    # Tile M. Block second-to-last dim must be a multiple of 8 (or the full
    # dim), so pad M up; the zero-padded rows are sliced off after the call.
    tm = min(block_m, _round_up(M, 8))
    m_pad = _round_up(M, tm)
    if m_pad != M:
        x2d = jnp.pad(x2d, ((0, m_pad - M), (0, 0)))
    grid_m = m_pad // tm

    itemsize = jnp.dtype(x.dtype).itemsize
    cost = pl.CostEstimate(
        flops=2 * m_pad * K * N,
        transcendentals=0,
        bytes_accessed=(m_pad * K + N * K + N + m_pad * N) * itemsize,
    )

    out2d = pl.pallas_call(
        _classifier_kernel,
        out_shape=jax.ShapeDtypeStruct((m_pad, N), x.dtype),
        grid_spec=pltpu.PrefetchScalarGridSpec(
            num_scalar_prefetch=0,
            grid=(grid_m,),
            in_specs=[
                pl.BlockSpec((tm, K), lambda i: (i, 0)),   # x tiles stream (pipelined)
                pl.BlockSpec((N, K), lambda i: (0, 0)),    # weight resident in VMEM
                pl.BlockSpec((1, N), lambda i: (0, 0)),    # bias resident in VMEM
            ],
            out_specs=pl.BlockSpec((tm, N), lambda i: (i, 0)),
        ),
        compiler_params=pltpu.CompilerParams(
            dimension_semantics=("parallel",),  # megacore sharding on v7x
        ),
        cost_estimate=cost,
    )(x2d, weight, b2d)

    if m_pad != M:
        out2d = out2d[:M]
    return out2d.reshape(*lead_shape, num_classes)


if __name__ == "__main__":
    ninp_classifier = 32 * 10   # 320, module default
    num_classes = 5

    key = jax.random.PRNGKey(0)
    kx, kw, kb = jax.random.split(key, 3)

    # Deterministic parameter init (mimics nn.Linear uniform(-1/sqrt(K), 1/sqrt(K))).
    bound = 1.0 / jnp.sqrt(jnp.float32(ninp_classifier))
    weight = jax.random.uniform(
        kw, (num_classes, ninp_classifier), jnp.float32, -bound, bound)
    bias = jax.random.uniform(kb, (num_classes,), jnp.float32, -bound, bound)

    # Example input: batch=2, seq=8, hidden=320 (last dim must equal ninp_classifier).
    x = jax.random.normal(kx, (2, 8, ninp_classifier), jnp.float32)

    out = classifier_layer(x, weight, bias)
    out = jax.block_until_ready(out)

    # Reference check against plain JAX.
    ref = x @ weight.T + bias
    assert out.shape == (2, 8, num_classes)
    assert jnp.allclose(out, ref, atol=1e-4, rtol=1e-4)

    print("KERNEL_OK")
</pallas_src>

<mosaic_0001>
module attributes {stable_mosaic.version = 11 : i64} {
  func.func @_classifier_kernel(%arg0: i32, %arg1: memref<16x320xf32, #tpu.memory_space<vmem>>, %arg2: memref<5x320xf32, #tpu.memory_space<vmem>>, %arg3: memref<1x5xf32, #tpu.memory_space<vmem>>, %arg4: memref<16x5xf32, #tpu.memory_space<vmem>>) attributes {dimension_semantics = [#tpu.dimension_semantics<parallel>], iteration_bounds = array<i64: 1>, scalar_prefetch = 0 : i64, scratch_operands = 0 : i64, tpu.core_type = #tpu.core_type<tc>, window_params = [{transform_indices = @transform_0, window_bounds = array<i64: 16, 320>}, {pipeline_mode = #tpu.pipeline_mode<synchronous>, transform_indices = @transform_1, window_bounds = array<i64: 5, 320>}, {pipeline_mode = #tpu.pipeline_mode<synchronous>, transform_indices = @transform_2, window_bounds = array<i64: 1, 5>}, {transform_indices = @transform_3, window_bounds = array<i64: 16, 5>}]} {
    %c0 = arith.constant 0 : index
    %c0_0 = arith.constant 0 : index
    %0 = vector.load %arg1[%c0, %c0_0] : memref<16x320xf32, #tpu.memory_space<vmem>>, vector<16x320xf32>
    %c0_1 = arith.constant 0 : index
    %c0_2 = arith.constant 0 : index
    %1 = vector.load %arg2[%c0_1, %c0_2] : memref<5x320xf32, #tpu.memory_space<vmem>>, vector<5x320xf32>
    %cst = arith.constant dense<0.000000e+00> : vector<16x5xf32>
    %2 = tpu.matmul %0, %1, %cst {dimension_numbers = #tpu.dot_dimension_numbers<[1], [1], [0], [0], [0, 0, 1, 0], [], []>} : vector<16x320xf32>, vector<5x320xf32>, vector<16x5xf32> -> vector<16x5xf32>
    %c0_3 = arith.constant 0 : index
    %c0_4 = arith.constant 0 : index
    %3 = vector.load %arg3[%c0_3, %c0_4] : memref<1x5xf32, #tpu.memory_space<vmem>>, vector<1x5xf32>
    %4 = vector.broadcast %3 : vector<1x5xf32> to vector<16x5xf32>
    %5 = arith.addf %2, %4 : vector<16x5xf32>
    %c0_5 = arith.constant 0 : index
    %c0_6 = arith.constant 0 : index
    %6 = vector.load %arg4[%c0_5, %c0_6] : memref<16x5xf32, #tpu.memory_space<vmem>>, vector<16x5xf32>
    tpu.vector_store %arg4[%c0_5, %c0_6], %5 {strides = array<i32>} : memref<16x5xf32, #tpu.memory_space<vmem>>, vector<16x5xf32>,
    return
  }
  func.func @transform_0(%arg0: i32) -> (i32, i32) {
    %c0_i32 = arith.constant 0 : i32
    %c0_i32_0 = arith.constant 0 : i32
    return %arg0, %c0_i32 : i32, i32
  }
  func.func @transform_1(%arg0: i32) -> (i32, i32) {
    %c0_i32 = arith.constant 0 : i32
    %c0_i32_0 = arith.constant 0 : i32
    %c0_i32_1 = arith.constant 0 : i32
    return %c0_i32, %c0_i32_0 : i32, i32
  }
  func.func @transform_2(%arg0: i32) -> (i32, i32) {
    %c0_i32 = arith.constant 0 : i32
    %c0_i32_0 = arith.constant 0 : i32
    %c0_i32_1 = arith.constant 0 : i32
    return %c0_i32, %c0_i32_0 : i32, i32
  }
  func.func @transform_3(%arg0: i32) -> (i32, i32) {
    %c0_i32 = arith.constant 0 : i32
    %c0_i32_0 = arith.constant 0 : i32
    return %arg0, %c0_i32 : i32, i32
  }
}

</mosaic_0001>

<llo_original>
// kernel: tpu_custom_call.1
$region0: #{tpu_custom_call.1}
  #allocation0 [shape = 'u32[]', space=smem, size = 0x4, offset = 0x4, fixed_abs, tag = 'smem constant byte address 0x4 - core index']
  #allocation1 [shape = 'u32[144,128]{1,0:T(1,128)}', space=vmem, size = 0x12000, scoped, tag = 'internal scratch']
  %s0 = inlined_call_operand.hbm [shape: f32[16,320], index: 0, kind: input, shape index: {}]
  %s1 = inlined_call_operand.hbm [shape: f32[5,320], index: 1, kind: input, shape index: {}]
  %s2 = inlined_call_operand.vmem [shape: f32[1,5], index: 2, kind: input, shape index: {}]
  %s3 = inlined_call_operand.vmem [shape: f32[16,5], index: 3, kind: output, shape index: {}]
  %s4 = sld [smem:[#allocation0]]
  $region30: #{tpu_custom_call.1} parent=0
    _
  %s6 = ssub.s32 1, %s4
  %s7 = scalar_select 0, %s6, %s4
  $region1: #{tpu_custom_call.1} parent=0
    #allocation2 [shape = 'u8[24576]{0}', space=vmem, size = 0x6000, scoped, tag = 'input window, operand 0, single buffered']
    #allocation3 [shape = 's32[1]{0}', space=sflag, size = 0x4, scoped, tag = 'scoped memory for tpu_custom_call.1']
    #allocation4 [shape = 'u8[12288]{0}', space=vmem, size = 0x3000, scoped, tag = 'input window, operand 1, single buffered']
    #allocation5 [shape = 's32[1]{0}', space=sflag, size = 0x4, scoped, tag = 'scoped memory for tpu_custom_call.1']
    %8 = vsyncpa [#allocation3], 0
    %9 = vsyncpa [#allocation5], 0
    // Predicated region
    $region2: #{tpu_custom_call.1} parent=1 // pred_check
      _
    $region3: #{tpu_custom_call.1} parent=1 // pred_check_branch
      %11 = sbr.rel (0) target = $region5
    $region4: #{tpu_custom_call.1} parent=1 // pred_region
      %s13 = ssub.s32 768, 768
      %14 = vsyncadd [#allocation3], %s13
      %s15 = sshll.u32 [#allocation2], 4
      %s16 = int_to_ptr.vmem [resolvable:$true] %s15
      %21 = dma.hbm_to_vmem [thread:$0]  %s0, 768, %s16, [#allocation3], 384, 384, 24
    $region5: #{tpu_custom_call.1} parent=1 // pred_fallthru
      _
    // Predicated region
    $region6: #{tpu_custom_call.1} parent=1 // pred_check
      _
    $region7: #{tpu_custom_call.1} parent=1 // pred_check_branch
      %23 = sbr.rel (0) target = $region9
    $region8: #{tpu_custom_call.1} parent=1 // pred_region
      %s25 = ssub.s32 384, 384
      %26 = vsyncadd [#allocation5], %s25
      %s28 = sshll.u32 [#allocation4], 4
      %s29 = int_to_ptr.vmem [resolvable:$true] %s28
      %31 = dma.hbm_to_vmem [thread:$0]  %s1, 384, %s29, [#allocation5]
    $region9: #{tpu_custom_call.1} parent=1 // pred_fallthru
      _
    // Predicated region
    $region10: #{tpu_custom_call.1} parent=1 // pred_check
      _
    $region11: #{tpu_custom_call.1} parent=1 // pred_check_branch
      %33 = sbr.rel (0) target = $region13
    $region12: #{tpu_custom_call.1} parent=1 // pred_region
      _
    $region13: #{tpu_custom_call.1} parent=1 // pred_fallthru
      _
    // Predicated region
    $region14: #{tpu_custom_call.1} parent=1 // pred_check
      _
    $region15: #{tpu_custom_call.1} parent=1 // pred_check_branch
      %35 = sbr.rel (0) target = $region17
    $region16: #{tpu_custom_call.1} parent=1 // pred_region
      %36 = dma.done [#allocation3], 768
    $region17: #{tpu_custom_call.1} parent=1 // pred_fallthru
      _
    // Predicated region
    $region18: #{tpu_custom_call.1} parent=1 // pred_check
      _
    $region19: #{tpu_custom_call.1} parent=1 // pred_check_branch
      %38 = sbr.rel (0) target = $region21
    $region20: #{tpu_custom_call.1} parent=1 // pred_region
      %39 = dma.done [#allocation5], 384
    $region21: #{tpu_custom_call.1} parent=1 // pred_fallthru
      _
    %v40 = vld [vmem:[#allocation2] sm:$0xff]
    %v41 = vld [vmem:[#allocation2 + $0x8] sm:$0xff]
    %v42 = vld [vmem:[#allocation2 + $0x10] sm:$0xff]
    %v43 = vld [vmem:[#allocation2 + $0x18] sm:$0xff]
    %v44 = vld [vmem:[#allocation2 + $0x20] sm:$0xff]
    %v45 = vld [vmem:[#allocation2 + $0x28] sm:$0xff]
    %v46 = vld [vmem:[#allocation4] sm:$0x1f]
    %v47 = vld [vmem:[#allocation4 + $0x8] sm:$0x1f]
    %v48 = vld [vmem:[#allocation4 + $0x10] sm:$0x1f]
    %v49 = vld [vmem:[%s2] sm:$0x1]
    %v51 = vlaneseq
    %v52 = vshrl.u32 %v51, 7
    %v53 = vsub.s32 0, %v52
    %v54 = vrot.slane %v49, %v53
    %vm56 = vcmask 523264
    %v58 = vsel %vm56, %v42, 0
    %v61 = vsel %vm56, %v45, 0
    %v64 = vsel %vm56, %v48, 0
    %66 = vmatprep.subr.mxu0 %v47
    %67 = vmatpush1.xpose.msra.mxu0 %v46
    %68 = vmatprep.subr.mxu0 0.0
    %69 = vmatpush1.xpose.msra.mxu0 0.0
    %70 = vmatprep.subr.mxu0 0.0
    %71 = vmatpush1.xpose.msra.mxu0 0.0
    %72 = vmatprep.subr.mxu0 0.0
    %73 = vmatpush1.xpose.msra.mxu0 0.0
    %74 = vmatprep.subr.mxu0 0.0
    %75 = vmatpush1.xpose.msra.mxu0 0.0
    %76 = vmatprep.subr.mxu0 0.0
    %77 = vmatpush1.xpose.msra.mxu0 0.0
    %78 = vmatprep.subr.mxu0 0.0
    %79 = vmatpush1.xpose.msra.mxu0 0.0
    %80 = vmatprep.subr.mxu0 0.0
    %81 = vmatpush1.xpose.msra.mxu0 0.0
    %82 = vmatprep.subr.mxu0 0.0
    %83 = vmatpush1.xpose.msra.mxu0 0.0
    %84 = vmatprep.subr.mxu0 0.0
    %85 = vmatpush1.xpose.msra.mxu0 0.0
    %86 = vmatprep.subr.mxu0 0.0
    %87 = vmatpush1.xpose.msra.mxu0 0.0
    %88 = vmatprep.subr.mxu0 0.0
    %89 = vmatpush1.xpose.msra.mxu0 0.0
    %90 = vmatprep.subr.mxu0 0.0
    %91 = vmatpush1.xpose.msra.mxu0 0.0
    %92 = vmatprep.subr.mxu0 0.0
    %93 = vmatpush1.xpose.msra.mxu0 0.0
    %94 = vmatprep.subr.mxu0 0.0
    %95 = vmatpush1.xpose.msra.mxu0 0.0
    %96 = vmatprep.subr.mxu0 0.0
    %97 = vmatpush1.xpose.msra.mxu0 0.0
    %98 = vmatprep.subr.mxu0 0.0
    %99 = vmatpush1.xpose.msra.mxu0 0.0
    %100 = vmatprep.subr.mxu0 0.0
    %101 = vmatpush1.xpose.msra.mxu0 0.0
    %102 = vmatprep.subr.mxu0 0.0
    %103 = vmatpush1.xpose.msra.mxu0 0.0
    %104 = vmatprep.subr.mxu0 0.0
    %105 = vmatpush1.xpose.msra.mxu0 0.0
    %106 = vmatprep.subr.mxu0 0.0
    %107 = vmatpush1.xpose.msra.mxu0 0.0
    %108 = vmatprep.subr.mxu0 0.0
    %109 = vmatpush1.xpose.msra.mxu0 0.0
    %110 = vmatprep.subr.mxu0 0.0
    %111 = vmatpush1.xpose.msra.mxu0 0.0
    %112 = vmatprep.subr.mxu0 0.0
    %113 = vmatpush1.xpose.msra.mxu0 0.0
    %114 = vmatprep.subr.mxu0 0.0
    %115 = vmatpush1.xpose.msra.mxu0 0.0
    %116 = vmatprep.subr.mxu0 0.0
    %117 = vmatpush1.xpose.msra.mxu0 0.0
    %118 = vmatprep.subr.mxu0 0.0
    %119 = vmatpush1.xpose.msra.mxu0 0.0
    %120 = vmatprep.subr.mxu0 0.0
    %121 = vmatpush1.xpose.msra.mxu0 0.0
    %122 = vmatprep.subr.mxu0 0.0
    %123 = vmatpush1.xpose.msra.mxu0 0.0
    %124 = vmatprep.subr.mxu0 0.0
    %125 = vmatpush1.xpose.msra.mxu0 0.0
    %126 = vmatprep.subr.mxu0 0.0
    %127 = vmatpush1.xpose.msra.mxu0 0.0
    %128 = vmatprep.subr.mxu0 0.0
    %129 = vmatpush1.xpose.msra.mxu0 0.0
    %130 = vmatprep.mubr.f32.mxu0 %v41
    %131 = vmatmul.mubr.f32.gmra.mrb[0].mxu0 %v40
    %v132 = vpop.f32.mrb[0].mxu0
    %v133 = vadd.f32 %v54, %v132
    %v134 = vpop.f32.mrb[0].mxu0
    %135 = vmatprep.mubr.f32.mxu0 %v44
    %136 = vmatmul.mubr.f32.gmra.mrb[0].mxu0 %v43
    %v137 = vpop.f32.mrb[0].mxu0
    %v138 = vadd.f32 %v54, %v137
    %v139 = vpop.f32.mrb[0].mxu0
    %140 = vdwg.mxu0
    %141 = vmatprep.subr.mxu0 0.0
    %142 = vmatpush1.xpose.msra.mxu0 %v64
    %143 = vmatprep.subr.mxu0 0.0
    %144 = vmatpush1.xpose.msra.mxu0 0.0
    %145 = vmatprep.subr.mxu0 0.0
    %146 = vmatpush1.xpose.msra.mxu0 0.0
    %147 = vmatprep.subr.mxu0 0.0
    %148 = vmatpush1.xpose.msra.mxu0 0.0
    %149 = vmatprep.subr.mxu0 0.0
    %150 = vmatpush1.xpose.msra.mxu0 0.0
    %151 = vmatprep.subr.mxu0 0.0
    %152 = vmatpush1.xpose.msra.mxu0 0.0
    %153 = vmatprep.subr.mxu0 0.0
    %154 = vmatpush1.xpose.msra.mxu0 0.0
    %155 = vmatprep.subr.mxu0 0.0
    %156 = vmatpush1.xpose.msra.mxu0 0.0
    %157 = vmatprep.subr.mxu0 0.0
    %158 = vmatpush1.xpose.msra.mxu0 0.0
    %159 = vmatprep.subr.mxu0 0.0
    %160 = vmatpush1.xpose.msra.mxu0 0.0
    %161 = vmatprep.subr.mxu0 0.0
    %162 = vmatpush1.xpose.msra.mxu0 0.0
    %163 = vmatprep.subr.mxu0 0.0
    %164 = vmatpush1.xpose.msra.mxu0 0.0
    %165 = vmatprep.subr.mxu0 0.0
    %166 = vmatpush1.xpose.msra.mxu0 0.0
    %167 = vmatprep.subr.mxu0 0.0
    %168 = vmatpush1.xpose.msra.mxu0 0.0
    %169 = vmatprep.subr.mxu0 0.0
    %170 = vmatpush1.xpose.msra.mxu0 0.0
    %171 = vmatprep.subr.mxu0 0.0
    %172 = vmatpush1.xpose.msra.mxu0 0.0
    %173 = vmatprep.subr.mxu0 0.0
    %174 = vmatpush1.xpose.msra.mxu0 0.0
    %175 = vmatprep.subr.mxu0 0.0
    %176 = vmatpush1.xpose.msra.mxu0 0.0
    %177 = vmatprep.subr.mxu0 0.0
    %178 = vmatpush1.xpose.msra.mxu0 0.0
    %179 = vmatprep.subr.mxu0 0.0
    %180 = vmatpush1.xpose.msra.mxu0 0.0
    %181 = vmatprep.subr.mxu0 0.0
    %182 = vmatpush1.xpose.msra.mxu0 0.0
    %183 = vmatprep.subr.mxu0 0.0
    %184 = vmatpush1.xpose.msra.mxu0 0.0
    %185 = vmatprep.subr.mxu0 0.0
    %186 = vmatpush1.xpose.msra.mxu0 0.0
    %187 = vmatprep.subr.mxu0 0.0
    %188 = vmatpush1.xpose.msra.mxu0 0.0
    %189 = vmatprep.subr.mxu0 0.0
    %190 = vmatpush1.xpose.msra.mxu0 0.0
    %191 = vmatprep.subr.mxu0 0.0
    %192 = vmatpush1.xpose.msra.mxu0 0.0
    %193 = vmatprep.subr.mxu0 0.0
    %194 = vmatpush1.xpose.msra.mxu0 0.0
    %195 = vmatprep.subr.mxu0 0.0
    %196 = vmatpush1.xpose.msra.mxu0 0.0
    %197 = vmatprep.subr.mxu0 0.0
    %198 = vmatpush1.xpose.msra.mxu0 0.0
    %199 = vmatprep.subr.mxu0 0.0
    %200 = vmatpush1.xpose.msra.mxu0 0.0
    %201 = vmatprep.subr.mxu0 0.0
    %202 = vmatpush1.xpose.msra.mxu0 0.0
    %203 = vmatprep.subr.mxu0 0.0
    %204 = vmatpush1.xpose.msra.mxu0 0.0
    %205 = vmatprep.mubr.f32.mxu0 0.0
    %206 = vmatmul.mubr.f32.gmra.mrb[0].mxu0 %v58
    %v207 = vpop.f32.mrb[0].mxu0
    %v208 = vadd.f32 %v133, %v207
    %v209 = vpop.f32.mrb[0].mxu0
    %210 = vmatprep.mubr.f32.mxu0 0.0
    %211 = vmatmul.mubr.f32.gmra.mrb[0].mxu0 %v61
    %v212 = vpop.f32.mrb[0].mxu0
    %v213 = vadd.f32 %v138, %v212
    %v214 = vpop.f32.mrb[0].mxu0
    %215 = vdwg.mxu0
    %vm216 = vcmask 39936
    %217 = vst.msk [vmem:[%s3] sm:$0xff] %vm216, %v208
    %218 = vst.msk [vmem:[%s3 + $0x8] sm:$0xff] %vm216, %v213
    // Predicated region
    $region22: #{tpu_custom_call.1} parent=1 // pred_check
      _
    $region23: #{tpu_custom_call.1} parent=1 // pred_check_branch
      %220 = sbr.rel (0) target = $region25
    $region24: #{tpu_custom_call.1} parent=1 // pred_region
      _
    $region25: #{tpu_custom_call.1} parent=1 // pred_fallthru
      _
    // Predicated region
    $region26: #{tpu_custom_call.1} parent=1 // pred_check
      _
    $region27: #{tpu_custom_call.1} parent=1 // pred_check_branch
      %222 = sbr.rel (0) target = $region29
    $region28: #{tpu_custom_call.1} parent=1 // pred_region
      _
    $region29: #{tpu_custom_call.1} parent=1 // pred_fallthru
      _
    %223 = vsyncpa [#allocation3], 1
    %224 = vsyncpa [#allocation5], 1

</llo_original>
